<compile_context>
chip_gen: v6e
topology: v6e:2x2x1
jax: 0.10.0
libtpu: 0.0.40
codegen_flags: <defaults>
</compile_context>

<pallas_src>
import math

import jax
import jax.numpy as jnp
from jax.experimental import pallas as pl
from jax.experimental.pallas import tpu as pltpu


def _maxpool_same_kernel(x_ref, o_ref):
    # x_ref: (k, rows_tile, L_out)  -- window offsets on the leading (untiled) axis
    # o_ref: (rows_tile, L_out)     -- lane-dense pooled output
    o_ref[...] = jnp.max(x_ref[...], axis=0)


def maxpool1d_pad_same(x, kernel_size, stride_size, *, row_tile=256):
    """TPU Pallas equivalent of MyMaxPool1dPadSame.forward(x).

    Faithfully reproduces the module: SAME padding computed with `stride_size`,
    but the pooling itself uses nn.MaxPool1d's default stride == kernel_size.
    Accepts (..., C, L)-shaped inputs; pools along the last axis.
    """
    k = int(kernel_size)
    s = int(stride_size)
    if x.ndim < 2:
        raise ValueError("expected input of rank >= 2: (..., C, L)")

    lead = x.shape[:-1]
    L = x.shape[-1]
    R = int(math.prod(lead))

    # --- SAME padding amounts (exactly as in the PyTorch module) -------------
    out_dim = (L + s - 1) // s
    p = max(0, (out_dim - 1) * s + k - L)
    pad_left = p // 2
    L_pad = L + p
    # nn.MaxPool1d(kernel_size=k): stride defaults to k, padding=0, floor mode.
    L_out = (L_pad - k) // k + 1
    L_use = L_out * k          # only the first L_use padded samples are read

    # --- wrapper-side layout plumbing (zero-pad, trim unread tail, split) ----
    x2 = x.reshape(R, L)
    high = L_use - pad_left - L                      # may be negative -> trim
    x2 = jax.lax.pad(x2, jnp.asarray(0, x2.dtype),
                     ((0, 0, 0), (pad_left, high, 0)))
    # (R, L_use) -> (R, L_out, k) -> (k, R, L_out): window offset leading,
    # pooled positions lane-dense on the minor axis, rows on sublanes.
    xw = x2.reshape(R, L_out, k).transpose(2, 0, 1)

    # --- row tiling: multiple-of-8 sublane tiles, or full extent -------------
    if R > row_tile:
        r_tile = row_tile       # multiple of 8; partial last block is masked
    else:
        r_tile = R              # full extent is always a legal block shape
    grid = (pl.cdiv(R, r_tile),)

    out = pl.pallas_call(
        _maxpool_same_kernel,
        out_shape=jax.ShapeDtypeStruct((R, L_out), x.dtype),
        grid=grid,
        in_specs=[pl.BlockSpec((k, r_tile, L_out), lambda r: (0, r, 0))],
        out_specs=pl.BlockSpec((r_tile, L_out), lambda r: (r, 0)),
        compiler_params=pltpu.CompilerParams(
            dimension_semantics=("parallel",),     # rows are independent
            vmem_limit_bytes=32 << 20,             # fits v5e/v6e/v7x VMEM
        ),
    )(xw)

    return out.reshape(lead + (L_out,))


def _reference_maxpool_pad_same(x, kernel_size, stride_size):
    """Pure-JAX reference mirroring the PyTorch module (for verification)."""
    k, s = int(kernel_size), int(stride_size)
    L = x.shape[-1]
    out_dim = (L + s - 1) // s
    p = max(0, (out_dim - 1) * s + k - L)
    pad_left = p // 2
    pad_right = p - pad_left
    xp = jnp.pad(x, [(0, 0)] * (x.ndim - 1) + [(pad_left, pad_right)])
    L_pad = L + p
    L_out = (L_pad - k) // k + 1
    xw = xp[..., : L_out * k].reshape(x.shape[:-1] + (L_out, k))
    return jnp.max(xw, axis=-1)


if __name__ == "__main__":
    key = jax.random.PRNGKey(0)
    batch, channels, length = 2, 4, 16
    x = jax.random.normal(key, (batch, channels, length), jnp.float32)

    # Exercise: padding-enters-window (3,3), stride != kernel quirk (3,2),
    # and the no-padding case (2,2).
    for (k, s) in [(3, 3), (3, 2), (2, 2)]:
        y = jax.block_until_ready(maxpool1d_pad_same(x, k, s))
        y_ref = _reference_maxpool_pad_same(x, k, s)
        assert y.shape == y_ref.shape, (k, s, y.shape, y_ref.shape)
        assert bool(jnp.array_equal(y, y_ref)), f"mismatch for kernel={k}, stride={s}"
        assert bool(jnp.all(jnp.isfinite(y)))

    print("KERNEL_OK")
</pallas_src>

<mosaic_0001>
module attributes {stable_mosaic.version = 11 : i64} {
  func.func @_maxpool_same_kernel(%arg0: i32, %arg1: memref<3x8x6xf32, #tpu.memory_space<vmem>>, %arg2: memref<8x6xf32, #tpu.memory_space<vmem>>) attributes {dimension_semantics = [#tpu.dimension_semantics<parallel>], iteration_bounds = array<i64: 1>, scalar_prefetch = 0 : i64, scratch_operands = 0 : i64, tpu.core_type = #tpu.core_type<tc>, window_params = [{transform_indices = @transform_0, window_bounds = array<i64: 3, 8, 6>}, {transform_indices = @transform_1, window_bounds = array<i64: 8, 6>}]} {
    %c0 = arith.constant 0 : index
    %c0_0 = arith.constant 0 : index
    %c0_1 = arith.constant 0 : index
    %0 = vector.load %arg1[%c0, %c0_0, %c0_1] : memref<3x8x6xf32, #tpu.memory_space<vmem>>, vector<3x8x6xf32>
    %cst = arith.constant dense<0xFF800000> : vector<8x6xf32>
    %1 = vector.multi_reduction <maximumf>, %0, %cst [0] : vector<3x8x6xf32> to vector<8x6xf32>
    %c0_2 = arith.constant 0 : index
    %c0_3 = arith.constant 0 : index
    %2 = vector.load %arg2[%c0_2, %c0_3] : memref<8x6xf32, #tpu.memory_space<vmem>>, vector<8x6xf32>
    tpu.vector_store %arg2[%c0_2, %c0_3], %1 {strides = array<i32>} : memref<8x6xf32, #tpu.memory_space<vmem>>, vector<8x6xf32>,
    return
  }
  func.func @transform_0(%arg0: i32) -> (i32, i32, i32) {
    %c0_i32 = arith.constant 0 : i32
    %c0_i32_0 = arith.constant 0 : i32
    %c0_i32_1 = arith.constant 0 : i32
    return %c0_i32, %arg0, %c0_i32_0 : i32, i32, i32
  }
  func.func @transform_1(%arg0: i32) -> (i32, i32) {
    %c0_i32 = arith.constant 0 : i32
    %c0_i32_0 = arith.constant 0 : i32
    return %arg0, %c0_i32 : i32, i32
  }
}

</mosaic_0001>

<llo_original>
// kernel: tpu_custom_call.1
$region0: #{tpu_custom_call.1}
  #allocation0 [shape = 'u32[]', space=smem, size = 0x4, offset = 0x4, fixed_abs, tag = 'smem constant byte address 0x4 - core index']
  #allocation1 [shape = 'u32[144,128]{1,0:T(1,128)}', space=vmem, size = 0x12000, scoped, tag = 'internal scratch']
  %s0 = inlined_call_operand.hbm [shape: f32[3,8,6], index: 0, kind: input, shape index: {}]
  %s1 = inlined_call_operand.hbm [shape: f32[8,6], index: 1, kind: output, shape index: {}]
  %s2 = sld [smem:[#allocation0]]
  $region18: #{tpu_custom_call.1} parent=0
    _
  %s4 = ssub.s32 1, %s2
  %s5 = scalar_select 0, %s4, %s2
  $region1: #{tpu_custom_call.1} parent=0
    #allocation2 [shape = 'u8[12288]{0}', space=vmem, size = 0x3000, scoped, tag = 'input window, operand 0, single buffered']
    #allocation3 [shape = 's32[1]{0}', space=sflag, size = 0x4, scoped, tag = 'scoped memory for tpu_custom_call.1']
    #allocation4 [shape = 's32[1]{0}', space=sflag, size = 0x4, scoped, tag = 'scoped memory for tpu_custom_call.1']
    #allocation5 [shape = 'u8[4096]{0}', space=vmem, size = 0x1000, scoped, tag = 'output window, operand 0, single buffered']
    %6 = vsyncpa [#allocation3], 0
    %7 = vsyncpa [#allocation4], 0
    // Predicated region
    $region2: #{tpu_custom_call.1} parent=1 // pred_check
      _
    $region3: #{tpu_custom_call.1} parent=1 // pred_check_branch
      %9 = sbr.rel (0) target = $region5
    $region4: #{tpu_custom_call.1} parent=1 // pred_region
      %s11 = ssub.s32 384, 384
      %12 = vsyncadd [#allocation3], %s11
      %s13 = sshll.u32 [#allocation2], 4
      %s14 = int_to_ptr.vmem [resolvable:$true] %s13
      %19 = dma.hbm_to_vmem [thread:$0]  %s0, 384, %s14, [#allocation3], 128, 128, 8
    $region5: #{tpu_custom_call.1} parent=1 // pred_fallthru
      _
    // Predicated region
    $region6: #{tpu_custom_call.1} parent=1 // pred_check
      _
    $region7: #{tpu_custom_call.1} parent=1 // pred_check_branch
      %21 = sbr.rel (0) target = $region9
    $region8: #{tpu_custom_call.1} parent=1 // pred_region
      %22 = dma.done [#allocation3], 384
    $region9: #{tpu_custom_call.1} parent=1 // pred_fallthru
      _
    %v23 = vld [vmem:[#allocation2] sm:$0xff]
    %v24 = vld [vmem:[#allocation2 + $0x8] sm:$0xff]
    %v25 = vld [vmem:[#allocation2 + $0x10] sm:$0xff]
    %vm26 = vcmask 48128
    %v27 = vsel %vm26, %v23, -inf
    %v28 = vsel %vm26, %v24, -inf
    %v29 = vsel %vm26, %v25, -inf
    %v30 = vmax.f32 %v27, %v28
    %v31 = vmax.f32 %v30, %v29
    %32 = vst.msk [vmem:[#allocation5] sm:$0xff] %vm26, %v31
    // Predicated region
    $region10: #{tpu_custom_call.1} parent=1 // pred_check
      _
    $region11: #{tpu_custom_call.1} parent=1 // pred_check_branch
      %34 = sbr.rel (0) target = $region13
    $region12: #{tpu_custom_call.1} parent=1 // pred_region
      %s36 = ssub.s32 128, 128
      %37 = vsyncadd [#allocation4], %s36
      %s39 = sshll.u32 [#allocation5], 4
      %s40 = int_to_ptr.vmem [resolvable:$true] %s39
      %42 = dma.vmem_to_hbm [thread:$0]  %s40, 128, %s1, [#allocation4]
    $region13: #{tpu_custom_call.1} parent=1 // pred_fallthru
      _
    // Predicated region
    $region14: #{tpu_custom_call.1} parent=1 // pred_check
      _
    $region15: #{tpu_custom_call.1} parent=1 // pred_check_branch
      %44 = sbr.rel (0) target = $region17
    $region16: #{tpu_custom_call.1} parent=1 // pred_region
      %45 = dma.done [#allocation4], 128
    $region17: #{tpu_custom_call.1} parent=1 // pred_fallthru
      _
    %46 = vsyncpa [#allocation3], 1
    %47 = vsyncpa [#allocation4], 1

</llo_original>
